<compile_context>
chip_gen: v7x
topology: tpu7x:2x2x1
jax: 0.10.0
libtpu: 0.0.40
codegen_flags: <defaults>
</compile_context>

<pallas_src>
import functools

import jax
import jax.numpy as jnp
from jax.experimental import pallas as pl
from jax.experimental.pallas import tpu as pltpu


def _ssn_kernel(x_ref, gamma_ref, beta_ref, o_ref, *, eps):
    # x_ref block: (N, Cblk, Fs*T) — whole batch and whole (sub-band x time)
    # extent for Cblk sub-spectral channels, so stats are complete per step.
    x = x_ref[...].astype(jnp.float32)
    n_per_chan = x.shape[0] * x.shape[2]                    # static: N * Fs * T

    # Fused single-pass statistics (f32 accumulation).
    s1 = jnp.sum(x, axis=(0, 2), keepdims=True)             # (1, Cblk, 1)
    s2 = jnp.sum(x * x, axis=(0, 2), keepdims=True)         # (1, Cblk, 1)
    mean = s1 / n_per_chan
    var = jnp.maximum(s2 / n_per_chan - mean * mean, 0.0)   # biased (training BN)
    inv_std = jax.lax.rsqrt(var + eps)

    gamma = gamma_ref[...].astype(jnp.float32)              # (1, Cblk, 1)
    beta = beta_ref[...].astype(jnp.float32)                # (1, Cblk, 1)
    scale = inv_std * gamma
    shift = beta - mean * scale

    # One FMA per element, dense along the Fs*T lane axis.
    o_ref[...] = (x * scale + shift).astype(o_ref.dtype)


def _pick_cblk(CS, elems_per_chan, bytes_per_elem, budget_bytes):
    """Pick the channel-block size.

    Constraints: Cblk divides CS and (Cblk % 8 == 0 or Cblk == CS) so the
    (Cblk, Fs*T) trailing block dims satisfy the (8, 128) tiling rule.
    Preference order:
      1) largest Cblk giving >= 2 grid steps with blocks >= ~2 MiB of data
         (pipelining overlap + megacore sharding),
      2) else largest Cblk whose modeled VMEM working set fits the budget,
      3) else the smallest legal Cblk (best effort).
    """
    candidates = [d for d in range(1, CS + 1)
                  if CS % d == 0 and (d == CS or d % 8 == 0)]
    fitting = [d for d in candidates
               if d * elems_per_chan * bytes_per_elem <= budget_bytes]
    if not fitting:
        return min(candidates)
    multi = [d for d in fitting
             if CS // d >= 2 and d * elems_per_chan * 4 >= (2 << 20)]
    return max(multi) if multi else max(fitting)


def sub_spectral_norm(x, gamma, beta, S, eps=1e-5):
    """x: (N, C, F, T) float; gamma/beta: (C*S,) float."""
    N, C, F, T = x.shape
    assert F % S == 0, "F must be divisible by S"
    CS = C * S
    Fs = F // S
    FsT = Fs * T

    # Free, contiguous reshapes (NCHW): merge (Fs, T) into one lane-dense axis.
    x_r = x.reshape(N, CS, FsT)
    gamma_r = gamma.astype(jnp.float32).reshape(1, CS, 1)
    beta_r = beta.astype(jnp.float32).reshape(1, CS, 1)

    itemsize = jnp.dtype(x.dtype).itemsize
    elems_per_chan = N * FsT

    # Per-element VMEM model: double-buffered input + output blocks in x's dtype
    # (4 * itemsize) plus in-kernel f32 temporaries (x upcast, x*x, result ~ 12 B).
    bytes_per_elem = 4 * itemsize + 12
    vmem_budget = 40 * 1024 * 1024          # fits v7x's 64 MiB/TC with headroom

    Cblk = _pick_cblk(CS, elems_per_chan, bytes_per_elem, vmem_budget)
    working_bytes = Cblk * elems_per_chan * bytes_per_elem
    vmem_limit = int(min(max(working_bytes + (8 << 20), 32 << 20), 64 << 20))

    kernel = functools.partial(_ssn_kernel, eps=eps)

    out_r = pl.pallas_call(
        kernel,
        out_shape=jax.ShapeDtypeStruct((N, CS, FsT), x.dtype),
        grid_spec=pltpu.PrefetchScalarGridSpec(
            num_scalar_prefetch=0,
            grid=(CS // Cblk,),
            in_specs=[
                # Cblk channels x whole batch x whole (Fs*T) per step; lane axis
                # is the full Fs*T extent (dense, unmasked stores).
                pl.BlockSpec((N, Cblk, FsT), lambda c: (0, c, 0)),
                # Per-block affine parameters, broadcastable against the x block.
                pl.BlockSpec((1, Cblk, 1), lambda c: (0, c, 0)),
                pl.BlockSpec((1, Cblk, 1), lambda c: (0, c, 0)),
            ],
            out_specs=pl.BlockSpec((N, Cblk, FsT), lambda c: (0, c, 0)),
        ),
        compiler_params=pltpu.CompilerParams(
            dimension_semantics=("parallel",),   # shard channel blocks across TCs
            vmem_limit_bytes=vmem_limit,
        ),
    )(x_r, gamma_r, beta_r)

    return out_r.reshape(N, C, F, T)


def sub_spectral_norm_ref(x, gamma, beta, S, eps=1e-5):
    """Pure-JAX reference (training-mode BatchNorm2d over C*S channels)."""
    N, C, F, T = x.shape
    CS = C * S
    xr = x.reshape(N, CS, F // S, T).astype(jnp.float32)
    mean = jnp.mean(xr, axis=(0, 2, 3), keepdims=True)
    var = jnp.mean((xr - mean) ** 2, axis=(0, 2, 3), keepdims=True)
    y = (xr - mean) / jnp.sqrt(var + eps)
    y = y * gamma.reshape(1, CS, 1, 1) + beta.reshape(1, CS, 1, 1)
    return y.reshape(N, C, F, T).astype(x.dtype)


if __name__ == "__main__":
    key = jax.random.PRNGKey(0)
    kx, kg, kb = jax.random.split(key, 3)

    N, C, F, T = 2, 4, 16, 16
    S = 2
    x = jax.random.normal(kx, (N, C, F, T), dtype=jnp.float32)

    # Deterministic affine parameters for BatchNorm2d(C*S).
    gamma = 1.0 + 0.1 * jax.random.normal(kg, (C * S,), dtype=jnp.float32)
    beta = 0.1 * jax.random.normal(kb, (C * S,), dtype=jnp.float32)

    out = sub_spectral_norm(x, gamma, beta, S)
    out = jax.block_until_ready(out)

    ref = sub_spectral_norm_ref(x, gamma, beta, S)
    assert out.shape == (N, C, F, T)
    assert jnp.allclose(out, ref, atol=1e-4, rtol=1e-4), "mismatch vs reference"

    print("KERNEL_OK")
</pallas_src>

<mosaic_0001>
module attributes {stable_mosaic.version = 11 : i64} {
  func.func @_ssn_kernel(%arg0: i32, %arg1: memref<2x8x128xf32, #tpu.memory_space<vmem>>, %arg2: memref<1x8x1xf32, #tpu.memory_space<vmem>>, %arg3: memref<1x8x1xf32, #tpu.memory_space<vmem>>, %arg4: memref<2x8x128xf32, #tpu.memory_space<vmem>>) attributes {dimension_semantics = [#tpu.dimension_semantics<parallel>], iteration_bounds = array<i64: 1>, scalar_prefetch = 0 : i64, scratch_operands = 0 : i64, tpu.core_type = #tpu.core_type<tc>, window_params = [{transform_indices = @transform_0, window_bounds = array<i64: 2, 8, 128>}, {transform_indices = @transform_1, window_bounds = array<i64: 1, 8, 1>}, {transform_indices = @transform_2, window_bounds = array<i64: 1, 8, 1>}, {transform_indices = @transform_3, window_bounds = array<i64: 2, 8, 128>}]} {
    %c0 = arith.constant 0 : index
    %c0_0 = arith.constant 0 : index
    %c0_1 = arith.constant 0 : index
    %0 = vector.load %arg1[%c0, %c0_0, %c0_1] : memref<2x8x128xf32, #tpu.memory_space<vmem>>, vector<2x8x128xf32>
    %cst = arith.constant dense<0.000000e+00> : vector<8xf32>
    %1 = vector.multi_reduction <add>, %0, %cst [0, 2] : vector<2x8x128xf32> to vector<8xf32>
    %2 = vector.shape_cast %1 : vector<8xf32> to vector<1x8x1xf32>
    %3 = arith.mulf %0, %0 : vector<2x8x128xf32>
    %cst_2 = arith.constant dense<0.000000e+00> : vector<8xf32>
    %4 = vector.multi_reduction <add>, %3, %cst_2 [0, 2] : vector<2x8x128xf32> to vector<8xf32>
    %5 = vector.shape_cast %4 : vector<8xf32> to vector<1x8x1xf32>
    %cst_3 = arith.constant 2.560000e+02 : f32
    %6 = vector.broadcast %cst_3 : f32 to vector<1x8x1xf32>
    %7 = arith.divf %2, %6 : vector<1x8x1xf32>
    %cst_4 = arith.constant 2.560000e+02 : f32
    %8 = vector.broadcast %cst_4 : f32 to vector<1x8x1xf32>
    %9 = arith.divf %5, %8 : vector<1x8x1xf32>
    %10 = arith.mulf %7, %7 : vector<1x8x1xf32>
    %11 = arith.subf %9, %10 : vector<1x8x1xf32>
    %cst_5 = arith.constant 0.000000e+00 : f32
    %12 = vector.broadcast %cst_5 : f32 to vector<1x8x1xf32>
    %13 = arith.maximumf %11, %12 : vector<1x8x1xf32>
    %cst_6 = arith.constant 9.99999974E-6 : f32
    %14 = vector.broadcast %cst_6 : f32 to vector<1x8x1xf32>
    %15 = arith.addf %13, %14 : vector<1x8x1xf32>
    %16 = math.rsqrt %15 : vector<1x8x1xf32>
    %c0_7 = arith.constant 0 : index
    %c0_8 = arith.constant 0 : index
    %c0_9 = arith.constant 0 : index
    %17 = vector.load %arg2[%c0_7, %c0_8, %c0_9] : memref<1x8x1xf32, #tpu.memory_space<vmem>>, vector<1x8x1xf32>
    %c0_10 = arith.constant 0 : index
    %c0_11 = arith.constant 0 : index
    %c0_12 = arith.constant 0 : index
    %18 = vector.load %arg3[%c0_10, %c0_11, %c0_12] : memref<1x8x1xf32, #tpu.memory_space<vmem>>, vector<1x8x1xf32>
    %19 = arith.mulf %16, %17 : vector<1x8x1xf32>
    %20 = arith.mulf %7, %19 : vector<1x8x1xf32>
    %21 = arith.subf %18, %20 : vector<1x8x1xf32>
    %22 = vector.broadcast %19 : vector<1x8x1xf32> to vector<2x8x128xf32>
    %23 = arith.mulf %0, %22 : vector<2x8x128xf32>
    %24 = vector.broadcast %21 : vector<1x8x1xf32> to vector<2x8x128xf32>
    %25 = arith.addf %23, %24 : vector<2x8x128xf32>
    %c0_13 = arith.constant 0 : index
    %c0_14 = arith.constant 0 : index
    %c0_15 = arith.constant 0 : index
    %26 = vector.load %arg4[%c0_13, %c0_14, %c0_15] : memref<2x8x128xf32, #tpu.memory_space<vmem>>, vector<2x8x128xf32>
    tpu.vector_store %arg4[%c0_13, %c0_14, %c0_15], %25 {strides = array<i32>} : memref<2x8x128xf32, #tpu.memory_space<vmem>>, vector<2x8x128xf32>,
    return
  }
  func.func @transform_0(%arg0: i32) -> (i32, i32, i32) {
    %c0_i32 = arith.constant 0 : i32
    %c0_i32_0 = arith.constant 0 : i32
    %c0_i32_1 = arith.constant 0 : i32
    return %c0_i32, %arg0, %c0_i32_0 : i32, i32, i32
  }
  func.func @transform_1(%arg0: i32) -> (i32, i32, i32) {
    %c0_i32 = arith.constant 0 : i32
    %c0_i32_0 = arith.constant 0 : i32
    %c0_i32_1 = arith.constant 0 : i32
    return %c0_i32, %arg0, %c0_i32_0 : i32, i32, i32
  }
  func.func @transform_2(%arg0: i32) -> (i32, i32, i32) {
    %c0_i32 = arith.constant 0 : i32
    %c0_i32_0 = arith.constant 0 : i32
    %c0_i32_1 = arith.constant 0 : i32
    return %c0_i32, %arg0, %c0_i32_0 : i32, i32, i32
  }
  func.func @transform_3(%arg0: i32) -> (i32, i32, i32) {
    %c0_i32 = arith.constant 0 : i32
    %c0_i32_0 = arith.constant 0 : i32
    %c0_i32_1 = arith.constant 0 : i32
    return %c0_i32, %arg0, %c0_i32_0 : i32, i32, i32
  }
}

</mosaic_0001>

<llo_original>
// kernel: tpu_custom_call.1
$region0: #{tpu_custom_call.1}
  #allocation0 [shape = 'u32[]', space=smem, size = 0x4, offset = 0x4, fixed_abs, tag = 'smem constant byte address 0x4 - core index']
  #allocation1 [shape = 'u32[144,128]{1,0:T(1,128)}', space=vmem, size = 0x12000, scoped, tag = 'internal scratch']
  %s0 = inlined_call_operand.vmem [shape: f32[2,8,128], index: 0, kind: input, shape index: {}]
  %s1 = inlined_call_operand.vmem [shape: f32[1,8,1], index: 1, kind: input, shape index: {}]
  %s2 = inlined_call_operand.vmem [shape: f32[1,8,1], index: 2, kind: input, shape index: {}]
  %s3 = inlined_call_operand.hbm [shape: f32[2,8,128], index: 3, kind: output, shape index: {}]
  %s4 = sld [smem:[#allocation0]]
  $region22: #{tpu_custom_call.1} parent=0
    _
  %s6 = ssub.s32 1, %s4
  %s7 = scalar_select 0, %s6, %s4
  $region1: #{tpu_custom_call.1} parent=0
    #allocation2 [shape = 'u8[8192]{0}', space=vmem, size = 0x2000, scoped, tag = 'output window, operand 0, single buffered']
    #allocation3 [shape = 's32[1]{0}', space=sflag, size = 0x4, scoped, tag = 'scoped memory for tpu_custom_call.1']
    %8 = vsyncpa [#allocation3], 0
    // Predicated region
    $region2: #{tpu_custom_call.1} parent=1 // pred_check
      _
    $region3: #{tpu_custom_call.1} parent=1 // pred_check_branch
      %10 = sbr.rel (0) target = $region5
    $region4: #{tpu_custom_call.1} parent=1 // pred_region
      _
    $region5: #{tpu_custom_call.1} parent=1 // pred_fallthru
      _
    // Predicated region
    $region6: #{tpu_custom_call.1} parent=1 // pred_check
      _
    $region7: #{tpu_custom_call.1} parent=1 // pred_check_branch
      %12 = sbr.rel (0) target = $region9
    $region8: #{tpu_custom_call.1} parent=1 // pred_region
      _
    $region9: #{tpu_custom_call.1} parent=1 // pred_fallthru
      _
    // Predicated region
    $region10: #{tpu_custom_call.1} parent=1 // pred_check
      _
    $region11: #{tpu_custom_call.1} parent=1 // pred_check_branch
      %14 = sbr.rel (0) target = $region13
    $region12: #{tpu_custom_call.1} parent=1 // pred_region
      _
    $region13: #{tpu_custom_call.1} parent=1 // pred_fallthru
      _
    %v15 = vld [vmem:[%s0] sm:$0xff]
    %v16 = vld [vmem:[%s0 + $0x8] sm:$0xff]
    %v17 = vadd.f32 %v15, %v16
    %18 = vadd.xlane.f32.xlu0 %v17
    %v19 = vpop.xlane.xlu0 %18
    %v20 = vmul.f32 %v15, %v15
    %v21 = vmul.f32 %v16, %v16
    %v22 = vadd.f32 %v20, %v21
    %23 = vadd.xlane.f32.xlu0 %v22
    %v24 = vpop.xlane.xlu0 %23
    %v25 = vrcp.pop 256.0
    %v26 = vmul.f32 %v19, %v25
    %v27 = vmul.f32 %v24, %v25
    %v28 = vmul.f32 %v26, %v26
    %v29 = vsub.f32 %v27, %v28
    %v30 = vmax.f32 %v29, 0.0
    %v31 = vadd.f32 %v30, 1e-05
    %v32 = vrsqrt.pop %v31
    %v33 = vld [vmem:[%s1] sm:$0xff]
    %v34 = vld [vmem:[%s2] sm:$0xff]
    %v35 = vmul.f32 %v32, %v33
    %v36 = vmul.f32 %v26, %v35
    %v37 = vsub.f32 %v34, %v36
    %39 = vset.pattern.permute.xlu0 0
    %40 = vperm.xlu0 %39, %v35
    %v41 = vpop.permute.xlu0 %40
    %v43 = vmul.f32 %v15, %v41
    %v44 = vmul.f32 %v16, %v41
    %46 = vset.pattern.permute.xlu0 0
    %47 = vperm.xlu0 %46, %v37
    %v48 = vpop.permute.xlu0 %47
    %v50 = vadd.f32 %v43, %v48
    %v51 = vadd.f32 %v44, %v48
    %52 = vst [vmem:[#allocation2] sm:$0xff] %v50
    %53 = vst [vmem:[#allocation2 + $0x8] sm:$0xff] %v51
    // Predicated region
    $region14: #{tpu_custom_call.1} parent=1 // pred_check
      _
    $region15: #{tpu_custom_call.1} parent=1 // pred_check_branch
      %55 = sbr.rel (0) target = $region17
    $region16: #{tpu_custom_call.1} parent=1 // pred_region
      %s57 = ssub.s32 256, 256
      %58 = vsyncadd [#allocation3], %s57
      %s59 = sshll.u32 [#allocation2], 4
      %s60 = int_to_ptr.vmem [resolvable:$true] %s59
      %65 = dma.vmem_to_hbm [thread:$0]  %s60, 256, %s3, [#allocation3], 128, 128, 8
    $region17: #{tpu_custom_call.1} parent=1 // pred_fallthru
      _
    // Predicated region
    $region18: #{tpu_custom_call.1} parent=1 // pred_check
      _
    $region19: #{tpu_custom_call.1} parent=1 // pred_check_branch
      %67 = sbr.rel (0) target = $region21
    $region20: #{tpu_custom_call.1} parent=1 // pred_region
      %68 = dma.done [#allocation3], 256
    $region21: #{tpu_custom_call.1} parent=1 // pred_fallthru
      _
    %69 = vsyncpa [#allocation3], 1

</llo_original>
